<compile_context>
chip_gen: v5e
topology: v5e:2x2
jax: 0.10.0
libtpu: 0.0.40
codegen_flags: <defaults>
</compile_context>

<pallas_src>
import functools
import math

import jax
import jax.numpy as jnp
from jax import lax
from jax.experimental import pallas as pl
from jax.experimental.pallas import tpu as pltpu

K = 5  # DGM_d default k


def _gcn_kernel(x_ref, w_ref, a_ref, b_ref, h32_ref, h16_ref):
    """h = relu(A[tile] @ (x @ W) + bias) for one (batch, query-row tile)."""
    # xw recomputed per tile: x/W blocks are revisited so there is no extra HBM
    # traffic, and the kernel is A-stream bound so the extra MXU work is free.
    # (Alternative: VMEM scratch + pl.when(q==0), but that forces the q axis to be
    #  "arbitrary" and loses the clean 2-way megacore split on v7x.)
    xw = jnp.dot(x_ref[0], w_ref[...],
                 preferred_element_type=jnp.float32).astype(jnp.bfloat16)    # (N, Dout)
    h = jnp.dot(a_ref[0], xw, preferred_element_type=jnp.float32) + b_ref[...]
    h = jnp.maximum(h, 0.0)
    h32_ref[0] = h                                                           # module output
    h16_ref[0] = h.astype(jnp.bfloat16)                                      # top-k input


def _argkmin_kernel(hq_ref, hk_ref, idx_ref, *, nb: int, k: int):
    """k nearest neighbours (squared euclidean) of each query row of this tile."""
    hq = hq_ref[0]                               # (TQ, D) bf16
    hk = hk_ref[0]                               # (N,  D) bf16

    # Ranking key per row i over columns j:  ||k_j||^2 - 2 q_i.k_j .
    # The row-constant ||q_i||^2 term and the positive exp(clamp(T)) scale do not
    # change per-row ordering; true distances are recomputed in f32 outside.
    hk_f32 = hk.astype(jnp.float32)
    sq_k = lax.dot_general(jnp.ones((1, hk.shape[-1]), jnp.bfloat16),
                           (hk_f32 * hk_f32).astype(jnp.bfloat16),
                           (((1,), (1,)), ((), ())),
                           preferred_element_type=jnp.float32)               # (1, N) row
    qk = lax.dot_general(hq, hk, (((1,), (1,)), ((), ())),
                         preferred_element_type=jnp.float32)                 # (TQ, N)
    lq = sq_k - 2.0 * qk                                                     # (TQ, N)

    # Monotone f32 -> int32 mapping, then pack the column index into the low `nb`
    # bits so a single min() per selection yields value+argmin at once (one XLU
    # reduce per neighbour instead of two; ties break to the smallest column).
    bits = pltpu.bitcast(lq, jnp.int32)
    skey = jnp.where(bits >= 0, bits, bits ^ jnp.int32(0x7FFFFFFF))
    col = lax.broadcasted_iota(jnp.int32, (1, lq.shape[-1]), 1)              # (1, N) row
    keyp = ((skey >> nb) << nb) | col                                        # (TQ, N)

    sentinel = jnp.int32(2 ** 31 - 1)
    low_mask = jnp.int32((1 << nb) - 1)
    sels = []
    for _ in range(k):
        kmin = jnp.min(keyp, axis=-1, keepdims=True)     # (TQ, 1): single XLU reduce
        sel = kmin & low_mask                            # argmin column
        sels.append(sel)
        keyp = jnp.where(col == sel, sentinel, keyp)     # drop selected column
    idx_ref[0] = jnp.concatenate(sels, axis=-1)          # one (TQ, k) store


def dgm_d_forward(x, A, W, bias, temperature, k=K):
    """DGM_d.forward (euclidean, sparse=True).  Returns (h, edges_hat, logprobs)."""
    B, N, Din = x.shape
    Dout = W.shape[1]
    assert k <= N

    # bf16 MXU inputs (cast once here; ideally A already arrives as bf16 so the cast
    # amortises -- the GCN kernel is HBM-bound on the A stream on every TPU gen).
    x16 = x.astype(jnp.bfloat16)
    a16 = A.astype(jnp.bfloat16)
    w16 = W.astype(jnp.bfloat16)
    bias32 = bias.astype(jnp.float32).reshape(1, Dout)

    cparams = pltpu.CompilerParams(
        dimension_semantics=("parallel", "parallel"),
        vmem_limit_bytes=64 * 1024 * 1024)

    # ---- kernel 1: fused GCN layer  h = relu(A @ (x @ W) + bias) ----
    TQ_E = min(N, 256)
    assert N % TQ_E == 0, "N must be divisible by the GCN query-row tile"
    h, h16 = pl.pallas_call(
        _gcn_kernel,
        out_shape=(jax.ShapeDtypeStruct((B, N, Dout), jnp.float32),
                   jax.ShapeDtypeStruct((B, N, Dout), jnp.bfloat16)),
        grid_spec=pltpu.PrefetchScalarGridSpec(
            num_scalar_prefetch=0,
            grid=(B, N // TQ_E),
            in_specs=[pl.BlockSpec((1, N, Din), lambda b, q: (b, 0, 0)),     # x_b (revisited)
                      pl.BlockSpec((Din, Dout), lambda b, q: (0, 0)),        # W   (revisited)
                      pl.BlockSpec((1, TQ_E, N), lambda b, q: (b, q, 0)),    # A row tile
                      pl.BlockSpec((1, Dout), lambda b, q: (0, 0))],         # bias
            out_specs=[pl.BlockSpec((1, TQ_E, Dout), lambda b, q: (b, q, 0)),
                       pl.BlockSpec((1, TQ_E, Dout), lambda b, q: (b, q, 0))]),
        compiler_params=cparams,
    )(x16, w16, a16, bias32)

    # ---- kernel 2: argKmin over scaled pairwise distances, tiled over query rows ----
    TQ_T = min(N, 128)          # smaller tile bounds live (TQ, N) slabs (v7x: 64 MiB VMEM)
    assert N % TQ_T == 0, "N must be divisible by the top-k query-row tile"
    nb = max(1, math.ceil(math.log2(N)))   # index bits packed into the ranking key
    indices = pl.pallas_call(
        functools.partial(_argkmin_kernel, nb=nb, k=k),
        out_shape=jax.ShapeDtypeStruct((B, N, k), jnp.int32),
        grid_spec=pltpu.PrefetchScalarGridSpec(
            num_scalar_prefetch=0,
            grid=(B, N // TQ_T),
            in_specs=[pl.BlockSpec((1, TQ_T, Dout), lambda b, q: (b, q, 0)),  # query rows
                      pl.BlockSpec((1, N, Dout), lambda b, q: (b, 0, 0))],    # keys (revisited)
            out_specs=pl.BlockSpec((1, TQ_T, k), lambda b, q: (b, q, 0))),
        compiler_params=cparams,
    )(h16, h16)

    # ---- logprobs recomputed from gathered f32 embeddings (matches torch.gather path) ----
    t = jnp.exp(jnp.clip(temperature, -5.0, 5.0)).astype(jnp.float32)
    flat_idx = indices.reshape(B, N * k)
    h1 = jnp.take_along_axis(
        h, jnp.broadcast_to(flat_idx[..., None], (B, N * k, Dout)), axis=1)   # gathered nbrs
    h2 = jnp.repeat(h, k, axis=1)                                             # (B, N*k, Dout)
    logprobs = (-jnp.sum((h1 - h2) ** 2, axis=-1) * t).reshape(B, N, k)

    # ---- edge construction glue (sparse=True branch) ----
    rows = jnp.broadcast_to(jnp.arange(N, dtype=jnp.int32)[None, :, None], (B, N, k))
    edges = jnp.stack((flat_idx, rows.reshape(B, -1)), axis=-2)               # (B, 2, N*k)
    offs = (jnp.arange(B, dtype=jnp.int32) * N)[:, None, None]
    edges_hat = jnp.transpose(edges + offs, (1, 0, 2)).reshape(2, -1)         # (2, B*N*k)
    # TODO(synk): PyTorch returns int64 edge indices; int32 is used here (TPU-native).
    return h, edges_hat, logprobs


if __name__ == "__main__":
    key = jax.random.PRNGKey(0)
    kx, ka, kw = jax.random.split(key, 3)

    B, N, DIN, DOUT = 2, 16, 32, 32
    x = jax.random.normal(kx, (B, N, DIN), dtype=jnp.float32)
    A = jax.random.uniform(ka, (B, N, N), dtype=jnp.float32)
    A = A / jnp.sum(A, axis=-1, keepdims=True)          # row-normalised propagation matrix

    # deterministic "parameters" (DGM_d.__init__: temperature=4.0 for euclidean)
    W = jax.random.normal(kw, (DIN, DOUT), dtype=jnp.float32) * 0.1
    bias = jnp.zeros((1, DOUT), dtype=jnp.float32)
    temperature = jnp.array(4.0, dtype=jnp.float32)

    fwd = jax.jit(dgm_d_forward)
    h, edges_hat, logprobs = fwd(x, A, W, bias, temperature)
    jax.block_until_ready((h, edges_hat, logprobs))

    # shape checks
    assert h.shape == (B, N, DOUT)
    assert edges_hat.shape == (2, B * N * K)
    assert logprobs.shape == (B, N, K)

    # numerical sanity: GCN layer vs. pure-JAX f32 reference (bf16 MXU tolerance)
    h_ref = jax.nn.relu(jnp.einsum("bij,bjd->bid", A, x @ W) + bias)
    assert bool(jnp.allclose(h, h_ref, rtol=5e-2, atol=5e-2))

    # indices must be valid, unique per row, and logprobs must equal the scaled
    # squared distance to the selected neighbours (computed from the returned h).
    idx = edges_hat[0].reshape(B, N, K) - (jnp.arange(B, dtype=jnp.int32) * N)[:, None, None]
    assert bool(jnp.all((idx >= 0) & (idx < N)))
    srt = jnp.sort(idx, axis=-1)
    assert bool(jnp.all(srt[..., 1:] != srt[..., :-1]))
    t = jnp.exp(jnp.clip(temperature, -5.0, 5.0))
    D = jnp.sum((h[:, :, None, :] - h[:, None, :, :]) ** 2, axis=-1)
    lp_ref = -jnp.take_along_axis(D, idx, axis=-1) * t
    assert bool(jnp.allclose(logprobs, lp_ref, rtol=1e-4, atol=1e-4))

    print("KERNEL_OK")
</pallas_src>

<mosaic_0001>
module attributes {stable_mosaic.version = 11 : i64} {
  func.func @_gcn_kernel(%arg0: i32, %arg1: i32, %arg2: memref<1x16x32xbf16, #tpu.memory_space<vmem>>, %arg3: memref<32x32xbf16, #tpu.memory_space<vmem>>, %arg4: memref<1x16x16xbf16, #tpu.memory_space<vmem>>, %arg5: memref<1x32xf32, #tpu.memory_space<vmem>>, %arg6: memref<1x16x32xf32, #tpu.memory_space<vmem>>, %arg7: memref<1x16x32xbf16, #tpu.memory_space<vmem>>) attributes {dimension_semantics = [#tpu.dimension_semantics<parallel>, #tpu.dimension_semantics<parallel>], iteration_bounds = array<i64: 2, 1>, scalar_prefetch = 0 : i64, scratch_operands = 0 : i64, tpu.core_type = #tpu.core_type<tc>, window_params = [{transform_indices = @transform_0, window_bounds = array<i64: 1, 16, 32>}, {pipeline_mode = #tpu.pipeline_mode<synchronous>, transform_indices = @transform_1, window_bounds = array<i64: 32, 32>}, {transform_indices = @transform_2, window_bounds = array<i64: 1, 16, 16>}, {pipeline_mode = #tpu.pipeline_mode<synchronous>, transform_indices = @transform_3, window_bounds = array<i64: 1, 32>}, {transform_indices = @transform_4, window_bounds = array<i64: 1, 16, 32>}, {transform_indices = @transform_5, window_bounds = array<i64: 1, 16, 32>}]} {
    %c0 = arith.constant 0 : index
    %c0_0 = arith.constant 0 : index
    %c0_1 = arith.constant 0 : index
    %0 = vector.load %arg2[%c0, %c0_0, %c0_1] : memref<1x16x32xbf16, #tpu.memory_space<vmem>>, vector<1x16x32xbf16>
    %1 = vector.shape_cast %0 : vector<1x16x32xbf16> to vector<16x32xbf16>
    %c0_2 = arith.constant 0 : index
    %c0_3 = arith.constant 0 : index
    %2 = vector.load %arg3[%c0_2, %c0_3] : memref<32x32xbf16, #tpu.memory_space<vmem>>, vector<32x32xbf16>
    %cst = arith.constant dense<0.000000e+00> : vector<16x32xf32>
    %3 = tpu.matmul %1, %2, %cst {dimension_numbers = #tpu.dot_dimension_numbers<[1], [0], [0], [1], [0, 0, 1, 1], [], []>} : vector<16x32xbf16>, vector<32x32xbf16>, vector<16x32xf32> -> vector<16x32xf32>
    %4 = arith.truncf %3 : vector<16x32xf32> to vector<16x32xbf16>
    %c0_4 = arith.constant 0 : index
    %c0_5 = arith.constant 0 : index
    %c0_6 = arith.constant 0 : index
    %5 = vector.load %arg4[%c0_4, %c0_5, %c0_6] : memref<1x16x16xbf16, #tpu.memory_space<vmem>>, vector<1x16x16xbf16>
    %6 = vector.shape_cast %5 : vector<1x16x16xbf16> to vector<16x16xbf16>
    %cst_7 = arith.constant dense<0.000000e+00> : vector<16x32xf32>
    %7 = tpu.matmul %6, %4, %cst_7 {dimension_numbers = #tpu.dot_dimension_numbers<[1], [0], [0], [1], [0, 0, 1, 1], [], []>} : vector<16x16xbf16>, vector<16x32xbf16>, vector<16x32xf32> -> vector<16x32xf32>
    %c0_8 = arith.constant 0 : index
    %c0_9 = arith.constant 0 : index
    %8 = vector.load %arg5[%c0_8, %c0_9] : memref<1x32xf32, #tpu.memory_space<vmem>>, vector<1x32xf32>
    %9 = vector.broadcast %8 : vector<1x32xf32> to vector<16x32xf32>
    %10 = arith.addf %7, %9 : vector<16x32xf32>
    %cst_10 = arith.constant 0.000000e+00 : f32
    %11 = vector.broadcast %cst_10 : f32 to vector<16x32xf32>
    %12 = arith.maximumf %10, %11 : vector<16x32xf32>
    %c0_11 = arith.constant 0 : index
    %c0_12 = arith.constant 0 : index
    %c0_13 = arith.constant 0 : index
    %13 = vector.load %arg6[%c0_11, %c0_12, %c0_13] : memref<1x16x32xf32, #tpu.memory_space<vmem>>, vector<1x16x32xf32>
    %14 = vector.shape_cast %13 : vector<1x16x32xf32> to vector<16x32xf32>
    %15 = vector.shape_cast %12 : vector<16x32xf32> to vector<1x16x32xf32>
    tpu.vector_store %arg6[%c0_11, %c0_12, %c0_13], %15 {strides = array<i32>} : memref<1x16x32xf32, #tpu.memory_space<vmem>>, vector<1x16x32xf32>,
    %16 = arith.truncf %12 : vector<16x32xf32> to vector<16x32xbf16>
    %c0_14 = arith.constant 0 : index
    %c0_15 = arith.constant 0 : index
    %c0_16 = arith.constant 0 : index
    %17 = vector.load %arg7[%c0_14, %c0_15, %c0_16] : memref<1x16x32xbf16, #tpu.memory_space<vmem>>, vector<1x16x32xbf16>
    %18 = vector.shape_cast %17 : vector<1x16x32xbf16> to vector<16x32xbf16>
    %19 = vector.shape_cast %16 : vector<16x32xbf16> to vector<1x16x32xbf16>
    tpu.vector_store %arg7[%c0_14, %c0_15, %c0_16], %19 {strides = array<i32>} : memref<1x16x32xbf16, #tpu.memory_space<vmem>>, vector<1x16x32xbf16>,
    return
  }
  func.func @transform_0(%arg0: i32, %arg1: i32) -> (i32, i32, i32) {
    %c0_i32 = arith.constant 0 : i32
    %c0_i32_0 = arith.constant 0 : i32
    %c0_i32_1 = arith.constant 0 : i32
    return %arg0, %c0_i32, %c0_i32_0 : i32, i32, i32
  }
  func.func @transform_1(%arg0: i32, %arg1: i32) -> (i32, i32) {
    %c0_i32 = arith.constant 0 : i32
    %c0_i32_0 = arith.constant 0 : i32
    %c0_i32_1 = arith.constant 0 : i32
    return %c0_i32, %c0_i32_0 : i32, i32
  }
  func.func @transform_2(%arg0: i32, %arg1: i32) -> (i32, i32, i32) {
    %c0_i32 = arith.constant 0 : i32
    %c0_i32_0 = arith.constant 0 : i32
    return %arg0, %arg1, %c0_i32 : i32, i32, i32
  }
  func.func @transform_3(%arg0: i32, %arg1: i32) -> (i32, i32) {
    %c0_i32 = arith.constant 0 : i32
    %c0_i32_0 = arith.constant 0 : i32
    %c0_i32_1 = arith.constant 0 : i32
    return %c0_i32, %c0_i32_0 : i32, i32
  }
  func.func @transform_4(%arg0: i32, %arg1: i32) -> (i32, i32, i32) {
    %c0_i32 = arith.constant 0 : i32
    %c0_i32_0 = arith.constant 0 : i32
    return %arg0, %arg1, %c0_i32 : i32, i32, i32
  }
  func.func @transform_5(%arg0: i32, %arg1: i32) -> (i32, i32, i32) {
    %c0_i32 = arith.constant 0 : i32
    %c0_i32_0 = arith.constant 0 : i32
    return %arg0, %arg1, %c0_i32 : i32, i32, i32
  }
}

module attributes {stable_mosaic.version = 11 : i64} {
  func.func @_argkmin_kernel(%arg0: i32, %arg1: i32, %arg2: memref<1x16x32xbf16, #tpu.memory_space<vmem>>, %arg3: memref<1x16x32xbf16, #tpu.memory_space<vmem>>, %arg4: memref<1x16x5xi32, #tpu.memory_space<vmem>>) attributes {dimension_semantics = [#tpu.dimension_semantics<parallel>, #tpu.dimension_semantics<parallel>], iteration_bounds = array<i64: 2, 1>, scalar_prefetch = 0 : i64, scratch_operands = 0 : i64, tpu.core_type = #tpu.core_type<tc>, window_params = [{transform_indices = @transform_0, window_bounds = array<i64: 1, 16, 32>}, {transform_indices = @transform_1, window_bounds = array<i64: 1, 16, 32>}, {transform_indices = @transform_2, window_bounds = array<i64: 1, 16, 5>}]} {
    %c0 = arith.constant 0 : index
    %c0_0 = arith.constant 0 : index
    %c0_1 = arith.constant 0 : index
    %0 = vector.load %arg2[%c0, %c0_0, %c0_1] : memref<1x16x32xbf16, #tpu.memory_space<vmem>>, vector<1x16x32xbf16>
    %1 = vector.shape_cast %0 : vector<1x16x32xbf16> to vector<16x32xbf16>
    %c0_2 = arith.constant 0 : index
    %c0_3 = arith.constant 0 : index
    %c0_4 = arith.constant 0 : index
    %2 = vector.load %arg3[%c0_2, %c0_3, %c0_4] : memref<1x16x32xbf16, #tpu.memory_space<vmem>>, vector<1x16x32xbf16>
    %3 = vector.shape_cast %2 : vector<1x16x32xbf16> to vector<16x32xbf16>
    %4 = arith.extf %3 : vector<16x32xbf16> to vector<16x32xf32>
    %cst = arith.constant 1.000000e+00 : bf16
    %5 = vector.broadcast %cst : bf16 to vector<1x32xbf16>
    %6 = arith.mulf %4, %4 : vector<16x32xf32>
    %7 = arith.truncf %6 : vector<16x32xf32> to vector<16x32xbf16>
    %cst_5 = arith.constant dense<0.000000e+00> : vector<1x16xf32>
    %8 = tpu.matmul %5, %7, %cst_5 {dimension_numbers = #tpu.dot_dimension_numbers<[1], [1], [0], [0], [0, 0, 1, 0], [], []>} : vector<1x32xbf16>, vector<16x32xbf16>, vector<1x16xf32> -> vector<1x16xf32>
    %cst_6 = arith.constant dense<0.000000e+00> : vector<16x16xf32>
    %9 = tpu.matmul %1, %3, %cst_6 {dimension_numbers = #tpu.dot_dimension_numbers<[1], [1], [0], [0], [0, 0, 1, 0], [], []>} : vector<16x32xbf16>, vector<16x32xbf16>, vector<16x16xf32> -> vector<16x16xf32>
    %cst_7 = arith.constant 2.000000e+00 : f32
    %10 = vector.broadcast %cst_7 : f32 to vector<16x16xf32>
    %11 = arith.mulf %10, %9 : vector<16x16xf32>
    %12 = vector.broadcast %8 : vector<1x16xf32> to vector<16x16xf32>
    %13 = arith.subf %12, %11 : vector<16x16xf32>
    %14 = tpu.bitcast %13 : vector<16x16xf32> -> vector<16x16xi32>
    %c0_i32 = arith.constant 0 : i32
    %15 = vector.broadcast %c0_i32 : i32 to vector<16x16xi32>
    %16 = arith.cmpi sge, %14, %15 : vector<16x16xi32>
    %c2147483647_i32 = arith.constant 2147483647 : i32
    %17 = vector.broadcast %c2147483647_i32 : i32 to vector<16x16xi32>
    %18 = arith.xori %14, %17 : vector<16x16xi32>
    %19 = arith.select %16, %14, %18 : vector<16x16xi1>, vector<16x16xi32>
    %20 = tpu.iota {dimensions = array<i32: 1>} : vector<1x16xi32>
    %c4_i32 = arith.constant 4 : i32
    %21 = vector.broadcast %c4_i32 : i32 to vector<16x16xi32>
    %22 = arith.shrsi %19, %21 : vector<16x16xi32>
    %c4_i32_8 = arith.constant 4 : i32
    %23 = vector.broadcast %c4_i32_8 : i32 to vector<16x16xi32>
    %24 = arith.shli %22, %23 : vector<16x16xi32>
    %25 = vector.broadcast %20 : vector<1x16xi32> to vector<16x16xi32>
    %26 = arith.ori %24, %25 : vector<16x16xi32>
    %cst_9 = arith.constant dense<2147483647> : vector<16xi32>
    %27 = vector.multi_reduction <minsi>, %26, %cst_9 [1] : vector<16x16xi32> to vector<16xi32>
    %28 = vector.shape_cast %27 : vector<16xi32> to vector<16x1xi32>
    %c15_i32 = arith.constant 15 : i32
    %29 = vector.broadcast %c15_i32 : i32 to vector<16x1xi32>
    %30 = arith.andi %28, %29 : vector<16x1xi32>
    %31 = vector.broadcast %20 : vector<1x16xi32> to vector<16x16xi32>
    %32 = vector.broadcast %30 : vector<16x1xi32> to vector<16x16xi32>
    %33 = arith.cmpi eq, %31, %32 : vector<16x16xi32>
    %c2147483647_i32_10 = arith.constant 2147483647 : i32
    %34 = vector.broadcast %c2147483647_i32_10 : i32 to vector<16x16xi32>
    %35 = arith.select %33, %34, %26 : vector<16x16xi1>, vector<16x16xi32>
    %cst_11 = arith.constant dense<2147483647> : vector<16xi32>
    %36 = vector.multi_reduction <minsi>, %35, %cst_11 [1] : vector<16x16xi32> to vector<16xi32>
    %37 = vector.shape_cast %36 : vector<16xi32> to vector<16x1xi32>
    %c15_i32_12 = arith.constant 15 : i32
    %38 = vector.broadcast %c15_i32_12 : i32 to vector<16x1xi32>
    %39 = arith.andi %37, %38 : vector<16x1xi32>
    %40 = vector.broadcast %20 : vector<1x16xi32> to vector<16x16xi32>
    %41 = vector.broadcast %39 : vector<16x1xi32> to vector<16x16xi32>
    %42 = arith.cmpi eq, %40, %41 : vector<16x16xi32>
    %c2147483647_i32_13 = arith.constant 2147483647 : i32
    %43 = vector.broadcast %c2147483647_i32_13 : i32 to vector<16x16xi32>
    %44 = arith.select %42, %43, %35 : vector<16x16xi1>, vector<16x16xi32>
    %cst_14 = arith.constant dense<2147483647> : vector<16xi32>
    %45 = vector.multi_reduction <minsi>, %44, %cst_14 [1] : vector<16x16xi32> to vector<16xi32>
    %46 = vector.shape_cast %45 : vector<16xi32> to vector<16x1xi32>
    %c15_i32_15 = arith.constant 15 : i32
    %47 = vector.broadcast %c15_i32_15 : i32 to vector<16x1xi32>
    %48 = arith.andi %46, %47 : vector<16x1xi32>
    %49 = vector.broadcast %20 : vector<1x16xi32> to vector<16x16xi32>
    %50 = vector.broadcast %48 : vector<16x1xi32> to vector<16x16xi32>
    %51 = arith.cmpi eq, %49, %50 : vector<16x16xi32>
    %c2147483647_i32_16 = arith.constant 2147483647 : i32
    %52 = vector.broadcast %c2147483647_i32_16 : i32 to vector<16x16xi32>
    %53 = arith.select %51, %52, %44 : vector<16x16xi1>, vector<16x16xi32>
    %cst_17 = arith.constant dense<2147483647> : vector<16xi32>
    %54 = vector.multi_reduction <minsi>, %53, %cst_17 [1] : vector<16x16xi32> to vector<16xi32>
    %55 = vector.shape_cast %54 : vector<16xi32> to vector<16x1xi32>
    %c15_i32_18 = arith.constant 15 : i32
    %56 = vector.broadcast %c15_i32_18 : i32 to vector<16x1xi32>
    %57 = arith.andi %55, %56 : vector<16x1xi32>
    %58 = vector.broadcast %20 : vector<1x16xi32> to vector<16x16xi32>
    %59 = vector.broadcast %57 : vector<16x1xi32> to vector<16x16xi32>
    %60 = arith.cmpi eq, %58, %59 : vector<16x16xi32>
    %c2147483647_i32_19 = arith.constant 2147483647 : i32
    %61 = vector.broadcast %c2147483647_i32_19 : i32 to vector<16x16xi32>
    %62 = arith.select %60, %61, %53 : vector<16x16xi1>, vector<16x16xi32>
    %cst_20 = arith.constant dense<2147483647> : vector<16xi32>
    %63 = vector.multi_reduction <minsi>, %62, %cst_20 [1] : vector<16x16xi32> to vector<16xi32>
    %64 = vector.shape_cast %63 : vector<16xi32> to vector<16x1xi32>
    %c15_i32_21 = arith.constant 15 : i32
    %65 = vector.broadcast %c15_i32_21 : i32 to vector<16x1xi32>
    %66 = arith.andi %64, %65 : vector<16x1xi32>
    %67 = tpu.concatenate %30, %39, %48, %57, %66 in 1 : vector<16x1xi32>, vector<16x1xi32>, vector<16x1xi32>, vector<16x1xi32>, vector<16x1xi32> -> vector<16x5xi32>
    %c0_22 = arith.constant 0 : index
    %c0_23 = arith.constant 0 : index
    %c0_24 = arith.constant 0 : index
    %68 = vector.load %arg4[%c0_22, %c0_23, %c0_24] : memref<1x16x5xi32, #tpu.memory_space<vmem>>, vector<1x16x5xi32>
    %69 = vector.shape_cast %68 : vector<1x16x5xi32> to vector<16x5xi32>
    %70 = vector.shape_cast %67 : vector<16x5xi32> to vector<1x16x5xi32>
    tpu.vector_store %arg4[%c0_22, %c0_23, %c0_24], %70 {strides = array<i32>} : memref<1x16x5xi32, #tpu.memory_space<vmem>>, vector<1x16x5xi32>,
    return
  }
  func.func @transform_0(%arg0: i32, %arg1: i32) -> (i32, i32, i32) {
    %c0_i32 = arith.constant 0 : i32
    %c0_i32_0 = arith.constant 0 : i32
    return %arg0, %arg1, %c0_i32 : i32, i32, i32
  }
  func.func @transform_1(%arg0: i32, %arg1: i32) -> (i32, i32, i32) {
    %c0_i32 = arith.constant 0 : i32
    %c0_i32_0 = arith.constant 0 : i32
    %c0_i32_1 = arith.constant 0 : i32
    return %arg0, %c0_i32, %c0_i32_0 : i32, i32, i32
  }
  func.func @transform_2(%arg0: i32, %arg1: i32) -> (i32, i32, i32) {
    %c0_i32 = arith.constant 0 : i32
    %c0_i32_0 = arith.constant 0 : i32
    return %arg0, %arg1, %c0_i32 : i32, i32, i32
  }
}

</mosaic_0001>

<llo_original>
// kernel: dgm_d_forward.3
$region0: #{dgm_d_forward.3}
  #allocation0 [shape = 'u32[]', space=smem, size = 0x4, offset = 0x4, fixed_abs, tag = 'smem constant byte address 0x4 - core index']
  #allocation1 [shape = 'u32[72,128]{1,0:T(1,128)}', space=vmem, size = 0x9000, scoped, tag = 'internal scratch']
  %s0 = inlined_call_operand.vmem [shape: bf16[2,16,32], index: 0, kind: input, shape index: {}, may-alias: {0,1}]
  %s1 = inlined_call_operand.vmem [shape: bf16[2,16,32], index: 1, kind: input, shape index: {}, may-alias: {0,1}]
  %s2 = inlined_call_operand.vmem [shape: s32[2,16,5], index: 2, kind: output, shape index: {}]
  %s3 = sld [smem:[#allocation0]]
  $region41: #{dgm_d_forward.3} parent=0
    _
  %s5 = ssub.s32 1, %s3
  %s6 = scalar_select 0, %s5, %s3
  loop: start=0, step=1, limit=4
  $region2: #{dgm_d_forward.3} parent=0 // loop_pre_header
    _
  $region3: #{dgm_d_forward.3} parent=0 // loop_header
    %s8 = sphi 0, %s12
    %p9 = scmp.ge.s32.totalorder %s8, 4
    %s15 = sphi 0, %s27
    %s16 = sphi 0, %s23
    %s17 = sphi 0, %s15
    %s18 = sphi 0, %s16
    %s19 = sphi 0, %s17
    %s20 = sphi 0, %s18
    %s32 = sphi 0, %s34
    %s35 = sphi 0, %s32
    %s36 = sphi 0, %s35
    %s52 = sphi 0, %s36
    %s58 = sphi 0, %s60
    %s61 = sphi 0, %s58
    %s62 = sphi 0, %s61
    %s78 = sphi 0, %s62
    %s86 = sphi 0, %s88
    %s89 = sphi 0, %s86
    %s90 = sphi 0, %s89
    %s106 = sphi 0, %s90
  $region4: #{dgm_d_forward.3} parent=0 // loop_header_branch
    %11 = sbr.rel (%p9) target = $region8
  $region5: #{dgm_d_forward.3} parent=0 // loop_body
    %s13 = ssub.s32 %s8, 1
    %s14 = ssub.s32 %s8, 2
    %s21 = sadd.s32 1, %s16
    %p22 = scmp.ge.s32.totalorder %s21, 1
    %s23 = scalar_select %p22, 0, %s21
    %s24 = sadd.s32 1, %s15
    %s25 = scalar_select %p22, %s24, %s15
    %p26 = scmp.ge.s32.totalorder %s25, 2
    %s27 = scalar_select %p26, 0, %s25
    %s28 = ssub.s32 %s15, %s27
    %s29 = ssub.s32 %s16, %s23
    %s30 = sor.u32 %s28, %s29
    %p31 = scmp.eq.s32.totalorder %s30, 0
    %s33 = sadd.s32 %s32, 1
    %s34 = scalar_select %p31, %s32, %s33
    %p37 = pneg %p31
    %p38 = scmp.eq.s32.totalorder %s8, 1
    %p39 = por %p37, %p38
    %p40 = scmp.ne.s32.totalorder %s32, %s35
    %p41 = scmp.eq.s32.totalorder %s8, 0
    %p42 = por %p40, %p41
    %p43 = scmp.ne.s32.totalorder %s32, %s35
    %p44 = scmp.eq.s32.totalorder %s13, 1
    %p45 = por %p43, %p44
    %p46 = scmp.ne.s32.totalorder %s35, %s36
    %p47 = scmp.eq.s32.totalorder %s13, 0
    %p48 = por %p46, %p47
    %p49 = scmp.ne.s32.totalorder %s35, %s36
    %p50 = scmp.eq.s32.totalorder %s14, 1
    %p51 = por %p49, %p50
    %p53 = scmp.ne.s32.totalorder %s36, %s52
    %p54 = scmp.eq.s32.totalorder %s14, 0
    %p55 = por %p53, %p54
    %s56 = ssub.s32 %s15, %s27
    %p57 = scmp.eq.s32.totalorder %s56, 0
    %s59 = sadd.s32 %s58, 1
    %s60 = scalar_select %p57, %s58, %s59
    %p63 = pneg %p57
    %p64 = scmp.eq.s32.totalorder %s8, 1
    %p65 = por %p63, %p64
    %p66 = scmp.ne.s32.totalorder %s58, %s61
    %p67 = scmp.eq.s32.totalorder %s8, 0
    %p68 = por %p66, %p67
    %p69 = scmp.ne.s32.totalorder %s58, %s61
    %p70 = scmp.eq.s32.totalorder %s13, 1
    %p71 = por %p69, %p70
    %p72 = scmp.ne.s32.totalorder %s61, %s62
    %p73 = scmp.eq.s32.totalorder %s13, 0
    %p74 = por %p72, %p73
    %p75 = scmp.ne.s32.totalorder %s61, %s62
    %p76 = scmp.eq.s32.totalorder %s14, 1
    %p77 = por %p75, %p76
    %p79 = scmp.ne.s32.totalorder %s62, %s78
    %p80 = scmp.eq.s32.totalorder %s14, 0
    %p81 = por %p79, %p80
    %s82 = ssub.s32 %s15, %s27
    %s83 = ssub.s32 %s16, %s23
    %s84 = sor.u32 %s82, %s83
    %p85 = scmp.eq.s32.totalorder %s84, 0
    %s87 = sadd.s32 %s86, 1
    %s88 = scalar_select %p85, %s86, %s87
    %p91 = pneg %p85
    %p92 = scmp.eq.s32.totalorder %s8, 1
    %p93 = por %p91, %p92
    %p94 = scmp.ne.s32.totalorder %s86, %s89
    %p95 = scmp.eq.s32.totalorder %s8, 0
    %p96 = por %p94, %p95
    %p97 = scmp.ne.s32.totalorder %s86, %s89
    %p98 = scmp.eq.s32.totalorder %s13, 1
    %p99 = por %p97, %p98
    %p100 = scmp.ne.s32.totalorder %s89, %s90
    %p101 = scmp.eq.s32.totalorder %s13, 0
    %p102 = por %p100, %p101
    %p103 = scmp.ne.s32.totalorder %s89, %s90
    %p104 = scmp.eq.s32.totalorder %s14, 1
    %p105 = por %p103, %p104
    %p107 = scmp.ne.s32.totalorder %s90, %s106
    %p108 = scmp.eq.s32.totalorder %s14, 0
    %p109 = por %p107, %p108
    %p110 = scmp.le.s32.totalorder 1, %s8
    %p111 = scmp.lt.s32.totalorder %s8, 3
    %p112 = pnand %p110, %p111
    %p113 = pneg %p112
    // Predicated region
    $region9: #{dgm_d_forward.3} parent=5 // pred_check
      _
    $region10: #{dgm_d_forward.3} parent=5 // pred_check_branch
      %115 = sbr.rel (%p112) target = $region12
    $region11: #{dgm_d_forward.3} parent=5 // pred_region
      %s116 = ssub.s32 %s8, 1
    $region12: #{dgm_d_forward.3} parent=5 // pred_fallthru
      _
    %p117 = scmp.lt.s32.totalorder %s8, 2
    // Predicated region
    $region13: #{dgm_d_forward.3} parent=5 // pred_check
      %p118 = pneg %p117
    $region14: #{dgm_d_forward.3} parent=5 // pred_check_branch
      %120 = sbr.rel (%p118) target = $region16
    $region15: #{dgm_d_forward.3} parent=5 // pred_region
      // Predicated region
      $region17: #{dgm_d_forward.3} parent=15 // pred_check
        %p121 = pneg %p42
      $region18: #{dgm_d_forward.3} parent=15 // pred_check_branch
        %123 = sbr.rel (%p121) target = $region20
      $region19: #{dgm_d_forward.3} parent=15 // pred_region
        %s124 = smul.u32 2, %s16
        %p125 = scmp.lt.s32.totalorder %s15, 1
        %s126 = scalar_select %p125, %s15, 1
        %p127 = scmp.lt.s32.totalorder %s124, 1
        %s128 = scalar_select %p127, %s124, 1
        %s129 = smul.addr %s126, 2
        %s130 = sadd.s32 %s128, %s129
        %s131 = smul.addr %s130, 4
        %s132 = scalar_lea.vmem %s0, %s131
        %s133 = smul.u32 2, %s16
      $region20: #{dgm_d_forward.3} parent=15 // pred_fallthru
        _
      // Predicated region
      $region21: #{dgm_d_forward.3} parent=15 // pred_check
        %p134 = pneg %p68
      $region22: #{dgm_d_forward.3} parent=15 // pred_check_branch
        %136 = sbr.rel (%p134) target = $region24
      $region23: #{dgm_d_forward.3} parent=15 // pred_region
        %p137 = scmp.lt.s32.totalorder %s15, 1
        %s138 = scalar_select %p137, %s15, 1
        %s139 = smul.addr %s138, 2
        %s140 = smul.addr %s139, 4
        %s141 = scalar_lea.vmem %s1, %s140
      $region24: #{dgm_d_forward.3} parent=15 // pred_fallthru
        _
    $region16: #{dgm_d_forward.3} parent=5 // pred_fallthru
      _
    %p142 = scmp.le.s32.totalorder 1, %s8
    %p143 = scmp.lt.s32.totalorder %s8, 3
    %p144 = pnand %p142, %p143
    %p145 = pneg %p144
    // Predicated region
    $region25: #{dgm_d_forward.3} parent=5 // pred_check
      _
    $region26: #{dgm_d_forward.3} parent=5 // pred_check_branch
      %147 = sbr.rel (%p144) target = $region28
    $region27: #{dgm_d_forward.3} parent=5 // pred_region
      %s148 = ssub.s32 %s8, 1
      %s149 = smul.u32 2, %s18
      %p150 = scmp.lt.s32.totalorder %s17, 1
      %s151 = scalar_select %p150, %s17, 1
      %p152 = scmp.lt.s32.totalorder %s149, 1
      %s153 = scalar_select %p152, %s149, 1
      %s154 = smul.addr %s151, 2
      %s155 = sadd.s32 %s153, %s154
      %s156 = smul.addr %s155, 4
      %s157 = scalar_lea.vmem %s0, %s156
      %p158 = pneg %p48
      %p159 = pneg %p45
      %p160 = scmp.lt.s32.totalorder %s17, 1
      %s161 = scalar_select %p160, %s17, 1
      %s162 = smul.addr %s161, 2
      %s163 = smul.addr %s162, 4
      %s164 = scalar_lea.vmem %s1, %s163
      %p165 = pneg %p74
      %p166 = pneg %p71
      %p167 = pneg %p102
      %p168 = pneg %p99
      %s169 = smul.u32 2, %s18
      %p170 = scmp.lt.s32.totalorder %s17, 1
      %s171 = scalar_select %p170, %s17, 1
      %p172 = scmp.lt.s32.totalorder %s169, 1
      %s173 = scalar_select %p172, %s169, 1
      %s174 = smul.addr %s171, 2
      %s175 = sadd.s32 %s173, %s174
      %s176 = smul.addr %s175, 8
      %s177 = scalar_lea.vmem %s2, %s176
      %s178 = smul.u32 2, %s18
      %p179 = scmp.lt.s32.totalorder %s17, 1
      %s180 = scalar_select %p179, %s17, 1
      %p181 = scmp.lt.s32.totalorder %s178, 1
      %s182 = scalar_select %p181, %s178, 1
      %s183 = smul.addr %s180, 2
      %s184 = sadd.s32 %s182, %s183
      %s185 = smul.addr %s184, 4
      %s186 = scalar_lea.vmem %s0, %s185
      %s187 = smul.u32 2, %s18
      %p188 = scmp.lt.s32.totalorder %s17, 1
      %s189 = scalar_select %p188, %s17, 1
      %s190 = smul.addr %s189, 2
      %s191 = smul.addr %s190, 4
      %s192 = scalar_lea.vmem %s1, %s191
      %s193 = smul.u32 2, %s18
      %p194 = scmp.lt.s32.totalorder %s17, 1
      %s195 = scalar_select %p194, %s17, 1
      %p196 = scmp.lt.s32.totalorder %s193, 1
      %s197 = scalar_select %p196, %s193, 1
      %s198 = smul.addr %s195, 2
      %s199 = sadd.s32 %s197, %s198
      %s200 = smul.addr %s199, 8
      %s201 = scalar_lea.vmem %s2, %s200
      %s202 = smul.u32 2, %s18
      %v205 = vld [vmem:[%s186] sm:$0xf]
      %v206 = vld [vmem:[%s186 + $0x4] sm:$0xf]
      %v207 = vld [vmem:[%s192] sm:$0xf]
      %v208 = vld [vmem:[%s192 + $0x4] sm:$0xf]
      %v209 = vunpack.c.l.bf16 %v207
      %v210 = vunpack.c.l.bf16 %v208
      %v211 = vmul.f32 %v209, %v209
      %v212 = vmul.f32 %v210, %v210
      %v213 = vpack.c.bf16 %v212, %v211
      %vm214 = vcmask 261120
      %v216 = vsel %vm214, 1065369472, 0
      %v219 = vsel %vm214, %v213, 0
      %221 = vmatpush.bf16.xpose.msra.mxu0 0
      %222 = vmatpush.bf16.xpose.msra.mxu0 0
      %223 = vmatpush.bf16.xpose.msra.mxu0 0
      %224 = vmatpush.bf16.xpose.msra.mxu0 0
      %225 = vmatpush.bf16.xpose.msra.mxu0 0
      %226 = vmatpush.bf16.xpose.msra.mxu0 0
      %227 = vmatpush.bf16.xpose.msra.mxu0 0
      %228 = vmatpush.bf16.xpose.msra.mxu0 %v219
      %229 = vmatmul.bf16.gmra.mxu0 %v216
      %v230 = vpop.f32.mrf.mxu0
      %v231 = vadd.f32 0.0, %v230
      %v232 = vpop.f32.mrf.mxu0
      %233 = vdwg.mxu0
      %v236 = vunpack.c.l.b16 %v205
      %v237 = vunpack.c.l.b16 %v206
      %v238 = vpack.c.b16 %v237, %v236
      %v241 = vunpack.c.l.b16 %v207
      %v242 = vunpack.c.l.b16 %v208
      %v243 = vpack.c.b16 %v242, %v241
      %v245 = vsel %vm214, %v238, 0
      %v248 = vsel %vm214, %v243, 0
      %250 = vmatpush.bf16.xpose.msra.mxu0 0
      %251 = vmatpush.bf16.xpose.msra.mxu0 0
      %252 = vmatpush.bf16.xpose.msra.mxu0 0
      %253 = vmatpush.bf16.xpose.msra.mxu0 0
      %254 = vmatpush.bf16.xpose.msra.mxu0 0
      %255 = vmatpush.bf16.xpose.msra.mxu0 0
      %256 = vmatpush.bf16.xpose.msra.mxu0 0
      %257 = vmatpush.bf16.xpose.msra.mxu0 %v248
      %258 = vmatmul.bf16.gmra.mxu0 %v245
      %v259 = vpop.f32.mrf.mxu0
      %v260 = vadd.f32 0.0, %v259
      %v261 = vpop.f32.mrf.mxu0
      %v262 = vadd.f32 0.0, %v261
      %263 = vdwg.mxu0
      %v264 = vmul.f32 %v260, 2.0
      %v265 = vmul.f32 %v262, 2.0
      %v266 = vperm.slane %v231, 0
      %v267 = vsub.f32 %v266, %v264
      %v268 = vsub.f32 %v266, %v265
      %vm271 = vcmp.ge.s32.totalorder %v267, 0
      %vm272 = vcmp.ge.s32.totalorder %v268, 0
      %v273 = vxor.u32 %v267, 2147483647
      %v274 = vxor.u32 %v268, 2147483647
      %v275 = vsel %vm271, %v267, %v273
      %v276 = vsel %vm272, %v268, %v274
      %v277 = vlaneseq
      %v278 = vand.u32 %v277, 127
      %v279 = vshra.s32 %v275, 4
      %v280 = vshra.s32 %v276, 4
      %v281 = vshll.u32 %v279, 4
      %v282 = vshll.u32 %v280, 4
      %v283 = vor.u32 %v281, %v278
      %v284 = vor.u32 %v282, %v278
      %vm285 = vcmask 130048
      %v286 = vsel %vm285, %v283, 2147483647
      %v287 = vand.u32 %v286, 65535
      %v288 = vshra.s32 %v286, 16
      %v289 = vcvt.s32.f32 %v287
      %v290 = vcvt.s32.f32 %v288
      %291 = vmin.xlane.f32.xlu0 %v290
      %v292 = vpop.xlane.xlu0 %291
      %vm293 = vcmp.eq.f32.partialorder %v290, %v292
      %v294 = vsel %vm293, %v289, inf
      %295 = vmin.xlane.f32.xlu0 %v294
      %v296 = vpop.xlane.xlu0 %295
      %v297 = vcvt.f32.s32 %v296
      %v298 = vcvt.f32.s32 %v292
      %v299 = vshll.u32 %v298, 16
      %v300 = vadd.s32 %v299, %v297
      %v301 = vsel %vm285, %v284, 2147483647
      %v302 = vand.u32 %v301, 65535
      %v303 = vshra.s32 %v301, 16
      %v304 = vcvt.s32.f32 %v302
      %v305 = vcvt.s32.f32 %v303
      %306 = vmin.xlane.f32.xlu0 %v305
      %v307 = vpop.xlane.xlu0 %306
      %vm308 = vcmp.eq.f32.partialorder %v305, %v307
      %v309 = vsel %vm308, %v304, inf
      %310 = vmin.xlane.f32.xlu0 %v309
      %v311 = vpop.xlane.xlu0 %310
      %v312 = vcvt.f32.s32 %v311
      %v313 = vcvt.f32.s32 %v307
      %v314 = vshll.u32 %v313, 16
      %v315 = vadd.s32 %v314, %v312
      %v316 = vand.u32 %v300, 15
      %v317 = vand.u32 %v315, 15
      %vm318 = vcmp.eq.s32.totalorder %v278, %v316
      %vm319 = vcmp.eq.s32.totalorder %v278, %v317
      %v320 = vsel %vm318, 2147483647, %v283
      %v321 = vsel %vm319, 2147483647, %v284
      %v322 = vsel %vm285, %v320, 2147483647
      %v323 = vand.u32 %v322, 65535
      %v324 = vshra.s32 %v322, 16
      %v325 = vcvt.s32.f32 %v323
      %v326 = vcvt.s32.f32 %v324
      %327 = vmin.xlane.f32.xlu0 %v326
      %v328 = vpop.xlane.xlu0 %327
      %vm329 = vcmp.eq.f32.partialorder %v326, %v328
      %v330 = vsel %vm329, %v325, inf
      %331 = vmin.xlane.f32.xlu0 %v330
      %v332 = vpop.xlane.xlu0 %331
      %v333 = vcvt.f32.s32 %v332
      %v334 = vcvt.f32.s32 %v328
      %v335 = vshll.u32 %v334, 16
      %v336 = vadd.s32 %v335, %v333
      %v337 = vsel %vm285, %v321, 2147483647
      %v338 = vand.u32 %v337, 65535
      %v339 = vshra.s32 %v337, 16
      %v340 = vcvt.s32.f32 %v338
      %v341 = vcvt.s32.f32 %v339
      %342 = vmin.xlane.f32.xlu0 %v341
      %v343 = vpop.xlane.xlu0 %342
      %vm344 = vcmp.eq.f32.partialorder %v341, %v343
      %v345 = vsel %vm344, %v340, inf
      %346 = vmin.xlane.f32.xlu0 %v345
      %v347 = vpop.xlane.xlu0 %346
      %v348 = vcvt.f32.s32 %v347
      %v349 = vcvt.f32.s32 %v343
      %v350 = vshll.u32 %v349, 16
      %v351 = vadd.s32 %v350, %v348
      %v352 = vand.u32 %v336, 15
      %v353 = vand.u32 %v351, 15
      %vm354 = vcmp.eq.s32.totalorder %v278, %v352
      %vm355 = vcmp.eq.s32.totalorder %v278, %v353
      %v356 = vsel %vm354, 2147483647, %v320
      %v357 = vsel %vm355, 2147483647, %v321
      %v358 = vsel %vm285, %v356, 2147483647
      %v359 = vand.u32 %v358, 65535
      %v360 = vshra.s32 %v358, 16
      %v361 = vcvt.s32.f32 %v359
      %v362 = vcvt.s32.f32 %v360
      %363 = vmin.xlane.f32.xlu0 %v362
      %v364 = vpop.xlane.xlu0 %363
      %vm365 = vcmp.eq.f32.partialorder %v362, %v364
      %v366 = vsel %vm365, %v361, inf
      %367 = vmin.xlane.f32.xlu0 %v366
      %v368 = vpop.xlane.xlu0 %367
      %v369 = vcvt.f32.s32 %v368
      %v370 = vcvt.f32.s32 %v364
      %v371 = vshll.u32 %v370, 16
      %v372 = vadd.s32 %v371, %v369
      %v373 = vsel %vm285, %v357, 2147483647
      %v374 = vand.u32 %v373, 65535
      %v375 = vshra.s32 %v373, 16
      %v376 = vcvt.s32.f32 %v374
      %v377 = vcvt.s32.f32 %v375
      %378 = vmin.xlane.f32.xlu0 %v377
      %v379 = vpop.xlane.xlu0 %378
      %vm380 = vcmp.eq.f32.partialorder %v377, %v379
      %v381 = vsel %vm380, %v376, inf
      %382 = vmin.xlane.f32.xlu0 %v381
      %v383 = vpop.xlane.xlu0 %382
      %v384 = vcvt.f32.s32 %v383
      %v385 = vcvt.f32.s32 %v379
      %v386 = vshll.u32 %v385, 16
      %v387 = vadd.s32 %v386, %v384
      %v388 = vand.u32 %v372, 15
      %v389 = vand.u32 %v387, 15
      %vm390 = vcmp.eq.s32.totalorder %v278, %v388
      %vm391 = vcmp.eq.s32.totalorder %v278, %v389
      %v392 = vsel %vm390, 2147483647, %v356
      %v393 = vsel %vm391, 2147483647, %v357
      %v394 = vsel %vm285, %v392, 2147483647
      %v395 = vand.u32 %v394, 65535
      %v396 = vshra.s32 %v394, 16
      %v397 = vcvt.s32.f32 %v395
      %v398 = vcvt.s32.f32 %v396
      %399 = vmin.xlane.f32.xlu0 %v398
      %v400 = vpop.xlane.xlu0 %399
      %vm401 = vcmp.eq.f32.partialorder %v398, %v400
      %v402 = vsel %vm401, %v397, inf
      %403 = vmin.xlane.f32.xlu0 %v402
      %v404 = vpop.xlane.xlu0 %403
      %v405 = vcvt.f32.s32 %v404
      %v406 = vcvt.f32.s32 %v400
      %v407 = vshll.u32 %v406, 16
      %v408 = vadd.s32 %v407, %v405
      %v409 = vsel %vm285, %v393, 2147483647
      %v410 = vand.u32 %v409, 65535
      %v411 = vshra.s32 %v409, 16
      %v412 = vcvt.s32.f32 %v410
      %v413 = vcvt.s32.f32 %v411
      %414 = vmin.xlane.f32.xlu0 %v413
      %v415 = vpop.xlane.xlu0 %414
      %vm416 = vcmp.eq.f32.partialorder %v413, %v415
      %v417 = vsel %vm416, %v412, inf
      %418 = vmin.xlane.f32.xlu0 %v417
      %v419 = vpop.xlane.xlu0 %418
      %v420 = vcvt.f32.s32 %v419
      %v421 = vcvt.f32.s32 %v415
      %v422 = vshll.u32 %v421, 16
      %v423 = vadd.s32 %v422, %v420
      %v424 = vand.u32 %v408, 15
      %v425 = vand.u32 %v423, 15
      %vm426 = vcmp.eq.s32.totalorder %v278, %v424
      %vm427 = vcmp.eq.s32.totalorder %v278, %v425
      %v428 = vsel %vm426, 2147483647, %v392
      %v429 = vsel %vm427, 2147483647, %v393
      %v430 = vsel %vm285, %v428, 2147483647
      %v431 = vand.u32 %v430, 65535
      %v432 = vshra.s32 %v430, 16
      %v433 = vcvt.s32.f32 %v431
      %v434 = vcvt.s32.f32 %v432
      %435 = vmin.xlane.f32.xlu0 %v434
      %v436 = vpop.xlane.xlu0 %435
      %vm437 = vcmp.eq.f32.partialorder %v434, %v436
      %v438 = vsel %vm437, %v433, inf
      %439 = vmin.xlane.f32.xlu0 %v438
      %v440 = vpop.xlane.xlu0 %439
      %v441 = vcvt.f32.s32 %v440
      %v442 = vcvt.f32.s32 %v436
      %v443 = vshll.u32 %v442, 16
      %v444 = vadd.s32 %v443, %v441
      %v445 = vsel %vm285, %v429, 2147483647
      %v446 = vand.u32 %v445, 65535
      %v447 = vshra.s32 %v445, 16
      %v448 = vcvt.s32.f32 %v446
      %v449 = vcvt.s32.f32 %v447
      %450 = vmin.xlane.f32.xlu0 %v449
      %v451 = vpop.xlane.xlu0 %450
      %vm452 = vcmp.eq.f32.partialorder %v449, %v451
      %v453 = vsel %vm452, %v448, inf
      %454 = vmin.xlane.f32.xlu0 %v453
      %v455 = vpop.xlane.xlu0 %454
      %v456 = vcvt.f32.s32 %v455
      %v457 = vcvt.f32.s32 %v451
      %v458 = vshll.u32 %v457, 16
      %v459 = vadd.s32 %v458, %v456
      %v460 = vand.u32 %v444, 15
      %v461 = vand.u32 %v459, 15
      %vm462 = vcmask 7168
      %v463 = vsel %vm462, %v316, %v352
      %v464 = vsel %vm462, %v317, %v353
      %vm465 = vcmask 15360
      %v466 = vsel %vm465, %v463, %v388
      %v467 = vsel %vm465, %v464, %v389
      %vm468 = vcmask 23552
      %v469 = vsel %vm468, %v466, %v424
      %v470 = vsel %vm468, %v467, %v425
      %vm471 = vcmask 31744
      %v472 = vsel %vm471, %v469, %v460
      %v473 = vsel %vm471, %v470, %v461
      %vm474 = vcmask 39936
      %475 = vst.msk [vmem:[%s201] sm:$0xff] %vm474, %v472
      %476 = vst.msk [vmem:[%s201 + $0x8] sm:$0xff] %vm474, %v473
      %s477 = smul.u32 2, %s18
      %p478 = scmp.lt.s32.totalorder %s17, 1
      %s479 = scalar_select %p478, %s17, 1
      %p480 = scmp.lt.s32.totalorder %s477, 1
      %s481 = scalar_select %p480, %s477, 1
      %s482 = smul.addr %s479, 2
      %s483 = sadd.s32 %s481, %s482
      %s484 = smul.addr %s483, 8
      %s485 = scalar_lea.vmem %s2, %s484
      // Predicated region
      $region29: #{dgm_d_forward.3} parent=27 // pred_check
        %p486 = pneg %p99
      $region30: #{dgm_d_forward.3} parent=27 // pred_check_branch
        %488 = sbr.rel (%p486) target = $region32
      $region31: #{dgm_d_forward.3} parent=27 // pred_region
        %s489 = smul.u32 2, %s18
      $region32: #{dgm_d_forward.3} parent=27 // pred_fallthru
        _
    $region28: #{dgm_d_forward.3} parent=5 // pred_fallthru
      _
    %p490 = scmp.le.s32.totalorder 2, %s8
    // Predicated region
    $region33: #{dgm_d_forward.3} parent=5 // pred_check
      %p491 = pneg %p490
    $region34: #{dgm_d_forward.3} parent=5 // pred_check_branch
      %493 = sbr.rel (%p491) target = $region36
    $region35: #{dgm_d_forward.3} parent=5 // pred_region
      %s494 = ssub.s32 %s8, 2
      // Predicated region
      $region37: #{dgm_d_forward.3} parent=35 // pred_check
        %p495 = pneg %p105
      $region38: #{dgm_d_forward.3} parent=35 // pred_check_branch
        %497 = sbr.rel (%p495) target = $region40
      $region39: #{dgm_d_forward.3} parent=35 // pred_region
        %s498 = smul.u32 2, %s20
        %p499 = scmp.lt.s32.totalorder %s19, 1
        %s500 = scalar_select %p499, %s19, 1
        %p501 = scmp.lt.s32.totalorder %s498, 1
        %s502 = scalar_select %p501, %s498, 1
        %s503 = smul.addr %s500, 2
        %s504 = sadd.s32 %s502, %s503
        %s505 = smul.addr %s504, 8
        %s506 = scalar_lea.vmem %s2, %s505
      $region40: #{dgm_d_forward.3} parent=35 // pred_fallthru
        _
    $region36: #{dgm_d_forward.3} parent=5 // pred_fallthru
      _
  $region6: #{dgm_d_forward.3} parent=0 // loop_footer
    %s12 = sadd.s32 1, %s8
  $region7: #{dgm_d_forward.3} parent=0 // loop_footer_branch
    %7 = sbr.rel target = $region3
  $region8: #{dgm_d_forward.3} parent=0 // loop_exit
    _

// kernel: dgm_d_forward.2
$region0: #{dgm_d_forward.2}
  #allocation0 [shape = 'u32[]', space=smem, size = 0x4, offset = 0x4, fixed_abs, tag = 'smem constant byte address 0x4 - core index']
  #allocation1 [shape = 'u32[72,128]{1,0:T(1,128)}', space=vmem, size = 0x9000, scoped, tag = 'internal scratch']
  %s0 = inlined_call_operand.vmem [shape: bf16[2,16,32], index: 0, kind: input, shape index: {}]
  %s1 = inlined_call_operand.vmem [shape: bf16[32,32], index: 1, kind: input, shape index: {}]
  %s2 = inlined_call_operand.vmem [shape: bf16[2,16,16], index: 2, kind: input, shape index: {}]
  %s3 = inlined_call_operand.hbm [shape: f32[1,32], index: 3, kind: input, shape index: {}]
  %s4 = inlined_call_operand.vmem [shape: f32[2,16,32], index: 4, kind: output, shape index: {0}]
  %s5 = inlined_call_operand.vmem [shape: bf16[2,16,32], index: 5, kind: output, shape index: {1}]
  %6 = xla_tuple %s4, %s5
  %s7 = sld [smem:[#allocation0]]
  $region61: #{dgm_d_forward.2} parent=0
    _
  %s9 = ssub.s32 1, %s7
  %s10 = scalar_select 0, %s9, %s7
  $region1: #{dgm_d_forward.2} parent=0
    #allocation2 [shape = 'u8[512]{0}', space=vmem, size = 0x400, scoped, tag = 'input window, operand 3, single buffered']
    #allocation3 [shape = 's32[2]{0}', space=sflag, size = 0x8, scoped, tag = 'scoped memory for dgm_d_forward.2']
    %11 = vsyncpa [#allocation3], 0
    loop: start=0, step=1, limit=4
    $region2: #{dgm_d_forward.2} parent=1 // loop_pre_header
      _
    $region3: #{dgm_d_forward.2} parent=1 // loop_header
      %s13 = sphi 0, %s17
      %p14 = scmp.ge.s32.totalorder %s13, 4
      %s20 = sphi 0, %s32
      %s21 = sphi 0, %s28
      %s22 = sphi 0, %s20
      %s23 = sphi 0, %s21
      %s24 = sphi 0, %s22
      %s25 = sphi 0, %s23
      %s35 = sphi 0, %s37
      %s38 = sphi 0, %s35
      %s39 = sphi 0, %s38
      %s55 = sphi 0, %s39
      %s59 = sphi 0, %s59
      %s61 = sphi 0, %s59
      %s62 = sphi 0, %s61
      %s76 = sphi 0, %s62
      %s84 = sphi 0, %s86
      %s87 = sphi 0, %s84
      %s88 = sphi 0, %s87
      %s104 = sphi 0, %s88
      %s108 = sphi 0, %s108
      %s110 = sphi 0, %s108
      %s111 = sphi 0, %s110
      %s125 = sphi 0, %s111
      %s133 = sphi 0, %s135
      %s136 = sphi 0, %s133
      %s137 = sphi 0, %s136
      %s153 = sphi 0, %s137
      %s161 = sphi 0, %s163
      %s164 = sphi 0, %s161
      %s165 = sphi 0, %s164
      %s181 = sphi 0, %s165
    $region4: #{dgm_d_forward.2} parent=1 // loop_header_branch
      %16 = sbr.rel (%p14) target = $region8
    $region5: #{dgm_d_forward.2} parent=1 // loop_body
      %s18 = ssub.s32 %s13, 1
      %s19 = ssub.s32 %s13, 2
      %s26 = sadd.s32 1, %s21
      %p27 = scmp.ge.s32.totalorder %s26, 1
      %s28 = scalar_select %p27, 0, %s26
      %s29 = sadd.s32 1, %s20
      %s30 = scalar_select %p27, %s29, %s20
      %p31 = scmp.ge.s32.totalorder %s30, 2
      %s32 = scalar_select %p31, 0, %s30
      %s33 = ssub.s32 %s20, %s32
      %p34 = scmp.eq.s32.totalorder %s33, 0
      %s36 = sadd.s32 %s35, 1
      %s37 = scalar_select %p34, %s35, %s36
      %p40 = pneg %p34
      %p41 = scmp.eq.s32.totalorder %s13, 1
      %p42 = por %p40, %p41
      %p43 = scmp.ne.s32.totalorder %s35, %s38
      %p44 = scmp.eq.s32.totalorder %s13, 0
      %p45 = por %p43, %p44
      %p46 = scmp.ne.s32.totalorder %s35, %s38
      %p47 = scmp.eq.s32.totalorder %s18, 1
      %p48 = por %p46, %p47
      %p49 = scmp.ne.s32.totalorder %s38, %s39
      %p50 = scmp.eq.s32.totalorder %s18, 0
      %p51 = por %p49, %p50
      %p52 = scmp.ne.s32.totalorder %s38, %s39
      %p53 = scmp.eq.s32.totalorder %s19, 1
      %p54 = por %p52, %p53
      %p56 = scmp.ne.s32.totalorder %s39, %s55
      %p57 = scmp.eq.s32.totalorder %s19, 0
      %p58 = por %p56, %p57
      %s60 = sadd.s32 %s59, 1
      %p63 = scmp.eq.s32.totalorder %s13, 1
      %p64 = scmp.ne.s32.totalorder %s59, %s61
      %p65 = scmp.eq.s32.totalorder %s13, 0
      %p66 = por %p64, %p65
      %p67 = scmp.ne.s32.totalorder %s59, %s61
      %p68 = scmp.eq.s32.totalorder %s18, 1
      %p69 = por %p67, %p68
      %p70 = scmp.ne.s32.totalorder %s61, %s62
      %p71 = scmp.eq.s32.totalorder %s18, 0
      %p72 = por %p70, %p71
      %p73 = scmp.ne.s32.totalorder %s61, %s62
      %p74 = scmp.eq.s32.totalorder %s19, 1
      %p75 = por %p73, %p74
      %p77 = scmp.ne.s32.totalorder %s62, %s76
      %p78 = scmp.eq.s32.totalorder %s19, 0
      %p79 = por %p77, %p78
      %s80 = ssub.s32 %s20, %s32
      %s81 = ssub.s32 %s21, %s28
      %s82 = sor.u32 %s80, %s81
      %p83 = scmp.eq.s32.totalorder %s82, 0
      %s85 = sadd.s32 %s84, 1
      %s86 = scalar_select %p83, %s84, %s85
      %p89 = pneg %p83
      %p90 = scmp.eq.s32.totalorder %s13, 1
      %p91 = por %p89, %p90
      %p92 = scmp.ne.s32.totalorder %s84, %s87
      %p93 = scmp.eq.s32.totalorder %s13, 0
      %p94 = por %p92, %p93
      %p95 = scmp.ne.s32.totalorder %s84, %s87
      %p96 = scmp.eq.s32.totalorder %s18, 1
      %p97 = por %p95, %p96
      %p98 = scmp.ne.s32.totalorder %s87, %s88
      %p99 = scmp.eq.s32.totalorder %s18, 0
      %p100 = por %p98, %p99
      %p101 = scmp.ne.s32.totalorder %s87, %s88
      %p102 = scmp.eq.s32.totalorder %s19, 1
      %p103 = por %p101, %p102
      %p105 = scmp.ne.s32.totalorder %s88, %s104
      %p106 = scmp.eq.s32.totalorder %s19, 0
      %p107 = por %p105, %p106
      %s109 = sadd.s32 %s108, 1
      %p112 = scmp.eq.s32.totalorder %s13, 1
      %p113 = scmp.ne.s32.totalorder %s108, %s110
      %p114 = scmp.eq.s32.totalorder %s13, 0
      %p115 = por %p113, %p114
      %p116 = scmp.ne.s32.totalorder %s108, %s110
      %p117 = scmp.eq.s32.totalorder %s18, 1
      %p118 = por %p116, %p117
      %p119 = scmp.ne.s32.totalorder %s110, %s111
      %p120 = scmp.eq.s32.totalorder %s18, 0
      %p121 = por %p119, %p120
      %p122 = scmp.ne.s32.totalorder %s110, %s111
      %p123 = scmp.eq.s32.totalorder %s19, 1
      %p124 = por %p122, %p123
      %p126 = scmp.ne.s32.totalorder %s111, %s125
      %p127 = scmp.eq.s32.totalorder %s19, 0
      %p128 = por %p126, %p127
      %s129 = ssub.s32 %s20, %s32
      %s130 = ssub.s32 %s21, %s28
      %s131 = sor.u32 %s129, %s130
      %p132 = scmp.eq.s32.totalorder %s131, 0
      %s134 = sadd.s32 %s133, 1
      %s135 = scalar_select %p132, %s133, %s134
      %p138 = pneg %p132
      %p139 = scmp.eq.s32.totalorder %s13, 1
      %p140 = por %p138, %p139
      %p141 = scmp.ne.s32.totalorder %s133, %s136
      %p142 = scmp.eq.s32.totalorder %s13, 0
      %p143 = por %p141, %p142
      %p144 = scmp.ne.s32.totalorder %s133, %s136
      %p145 = scmp.eq.s32.totalorder %s18, 1
      %p146 = por %p144, %p145
      %p147 = scmp.ne.s32.totalorder %s136, %s137
      %p148 = scmp.eq.s32.totalorder %s18, 0
      %p149 = por %p147, %p148
      %p150 = scmp.ne.s32.totalorder %s136, %s137
      %p151 = scmp.eq.s32.totalorder %s19, 1
      %p152 = por %p150, %p151
      %p154 = scmp.ne.s32.totalorder %s137, %s153
      %p155 = scmp.eq.s32.totalorder %s19, 0
      %p156 = por %p154, %p155
      %s157 = ssub.s32 %s20, %s32
      %s158 = ssub.s32 %s21, %s28
      %s159 = sor.u32 %s157, %s158
      %p160 = scmp.eq.s32.totalorder %s159, 0
      %s162 = sadd.s32 %s161, 1
      %s163 = scalar_select %p160, %s161, %s162
      %p166 = pneg %p160
      %p167 = scmp.eq.s32.totalorder %s13, 1
      %p168 = por %p166, %p167
      %p169 = scmp.ne.s32.totalorder %s161, %s164
      %p170 = scmp.eq.s32.totalorder %s13, 0
      %p171 = por %p169, %p170
      %p172 = scmp.ne.s32.totalorder %s161, %s164
      %p173 = scmp.eq.s32.totalorder %s18, 1
      %p174 = por %p172, %p173
      %p175 = scmp.ne.s32.totalorder %s164, %s165
      %p176 = scmp.eq.s32.totalorder %s18, 0
      %p177 = por %p175, %p176
      %p178 = scmp.ne.s32.totalorder %s164, %s165
      %p179 = scmp.eq.s32.totalorder %s19, 1
      %p180 = por %p178, %p179
      %p182 = scmp.ne.s32.totalorder %s165, %s181
      %p183 = scmp.eq.s32.totalorder %s19, 0
      %p184 = por %p182, %p183
      %p185 = scmp.le.s32.totalorder 1, %s13
      %p186 = scmp.lt.s32.totalorder %s13, 3
      %p187 = pnand %p185, %p186
      %p188 = pneg %p187
      // Predicated region
      $region9: #{dgm_d_forward.2} parent=5 // pred_check
        _
      $region10: #{dgm_d_forward.2} parent=5 // pred_check_branch
        %190 = sbr.rel (%p187) target = $region12
      $region11: #{dgm_d_forward.2} parent=5 // pred_region
        %s191 = ssub.s32 %s13, 1
        // Predicated region
        $region13: #{dgm_d_forward.2} parent=11 // pred_check
          %p192 = pneg %p72
        $region14: #{dgm_d_forward.2} parent=11 // pred_check_branch
          %194 = sbr.rel (%p192) target = $region16
        $region15: #{dgm_d_forward.2} parent=11 // pred_region
          _
        $region16: #{dgm_d_forward.2} parent=11 // pred_fallthru
          _
        // Predicated region
        $region17: #{dgm_d_forward.2} parent=11 // pred_check
          %p195 = pneg %p121
        $region18: #{dgm_d_forward.2} parent=11 // pred_check_branch
          %197 = sbr.rel (%p195) target = $region20
        $region19: #{dgm_d_forward.2} parent=11 // pred_region
          %199 = vsyncadd [#allocation3], 0
          %s201 = sshll.u32 %s3, 4
          %s202 = int_to_ptr.hbm [resolvable:$true] %s201
          %s203 = sshll.u32 [#allocation2], 4
          %s204 = int_to_ptr.vmem [resolvable:$true] %s203
          %206 = dma.hbm_to_vmem [thread:$0]  %s202, 16, %s204, [#allocation3]
        $region20: #{dgm_d_forward.2} parent=11 // pred_fallthru
          _
      $region12: #{dgm_d_forward.2} parent=5 // pred_fallthru
        _
      %p207 = scmp.lt.s32.totalorder %s13, 2
      // Predicated region
      $region21: #{dgm_d_forward.2} parent=5 // pred_check
        %p208 = pneg %p207
      $region22: #{dgm_d_forward.2} parent=5 // pred_check_branch
        %210 = sbr.rel (%p208) target = $region24
      $region23: #{dgm_d_forward.2} parent=5 // pred_region
        // Predicated region
        $region25: #{dgm_d_forward.2} parent=23 // pred_check
          %p211 = pneg %p45
        $region26: #{dgm_d_forward.2} parent=23 // pred_check_branch
          %213 = sbr.rel (%p211) target = $region28
        $region27: #{dgm_d_forward.2} parent=23 // pred_region
          %p214 = scmp.lt.s32.totalorder %s20, 1
          %s215 = scalar_select %p214, %s20, 1
          %s216 = smul.addr %s215, 2
          %s217 = smul.addr %s216, 4
          %s218 = scalar_lea.vmem %s0, %s217
        $region28: #{dgm_d_forward.2} parent=23 // pred_fallthru
          _
        // Predicated region
        $region29: #{dgm_d_forward.2} parent=23 // pred_check
          %p219 = pneg %p94
        $region30: #{dgm_d_forward.2} parent=23 // pred_check_branch
          %221 = sbr.rel (%p219) target = $region32
        $region31: #{dgm_d_forward.2} parent=23 // pred_region
          %s222 = smul.u32 2, %s21
          %p223 = scmp.lt.s32.totalorder %s20, 1
          %s224 = scalar_select %p223, %s20, 1
          %p225 = scmp.lt.s32.totalorder %s222, 1
          %s226 = scalar_select %p225, %s222, 1
          %s227 = smul.addr %s224, 2
          %s228 = sadd.s32 %s226, %s227
          %s229 = smul.addr %s228, 4
          %s230 = scalar_lea.vmem %s2, %s229
          %s231 = smul.u32 2, %s21
        $region32: #{dgm_d_forward.2} parent=23 // pred_fallthru
          _
      $region24: #{dgm_d_forward.2} parent=5 // pred_fallthru
        _
      %p232 = scmp.le.s32.totalorder 1, %s13
      %p233 = scmp.lt.s32.totalorder %s13, 3
      %p234 = pnand %p232, %p233
      %p235 = pneg %p234
      // Predicated region
      $region33: #{dgm_d_forward.2} parent=5 // pred_check
        _
      $region34: #{dgm_d_forward.2} parent=5 // pred_check_branch
        %237 = sbr.rel (%p234) target = $region36
      $region35: #{dgm_d_forward.2} parent=5 // pred_region
        %s238 = ssub.s32 %s13, 1
        // Predicated region
        $region37: #{dgm_d_forward.2} parent=35 // pred_check
          %p239 = pneg %p121
        $region38: #{dgm_d_forward.2} parent=35 // pred_check_branch
          %241 = sbr.rel (%p239) target = $region40
        $region39: #{dgm_d_forward.2} parent=35 // pred_region
          %243 = dma.done [#allocation3], 16
        $region40: #{dgm_d_forward.2} parent=35 // pred_fallthru
          _
        %p244 = scmp.lt.s32.totalorder %s22, 1
        %s245 = scalar_select %p244, %s22, 1
        %s246 = smul.addr %s245, 2
        %s247 = smul.addr %s246, 4
        %s248 = scalar_lea.vmem %s0, %s247
        %p249 = pneg %p51
        %p250 = pneg %p48
        %p251 = pneg %p72
        %p252 = pneg %p69
        %s253 = smul.u32 2, %s23
        %p254 = scmp.lt.s32.totalorder %s22, 1
        %s255 = scalar_select %p254, %s22, 1
        %p256 = scmp.lt.s32.totalorder %s253, 1
        %s257 = scalar_select %p256, %s253, 1
        %s258 = smul.addr %s255, 2
        %s259 = sadd.s32 %s257, %s258
        %s260 = smul.addr %s259, 4
        %s261 = scalar_lea.vmem %s2, %s260
        %p262 = pneg %p100
        %p263 = pneg %p97
        %p264 = pneg %p121
        %p265 = pneg %p118
        %p266 = pneg %p149
        %p267 = pneg %p146
        %s268 = smul.u32 2, %s23
        %p269 = scmp.lt.s32.totalorder %s22, 1
        %s270 = scalar_select %p269, %s22, 1
        %p271 = scmp.lt.s32.totalorder %s268, 1
        %s272 = scalar_select %p271, %s268, 1
        %s273 = smul.addr %s270, 2
        %s274 = sadd.s32 %s272, %s273
        %s275 = smul.addr %s274, 8
        %s276 = scalar_lea.vmem %s4, %s275
        %p277 = pneg %p177
        %p278 = pneg %p174
        %s279 = smul.u32 2, %s23
        %p280 = scmp.lt.s32.totalorder %s22, 1
        %s281 = scalar_select %p280, %s22, 1
        %p282 = scmp.lt.s32.totalorder %s279, 1
        %s283 = scalar_select %p282, %s279, 1
        %s284 = smul.addr %s281, 2
        %s285 = sadd.s32 %s283, %s284
        %s286 = smul.addr %s285, 4
        %s287 = scalar_lea.vmem %s5, %s286
        %p288 = scmp.lt.s32.totalorder %s22, 1
        %s289 = scalar_select %p288, %s22, 1
        %s290 = smul.addr %s289, 2
        %s291 = smul.addr %s290, 4
        %s292 = scalar_lea.vmem %s0, %s291
        %s293 = smul.u32 2, %s23
        %p294 = scmp.lt.s32.totalorder %s22, 1
        %s295 = scalar_select %p294, %s22, 1
        %p296 = scmp.lt.s32.totalorder %s293, 1
        %s297 = scalar_select %p296, %s293, 1
        %s298 = smul.addr %s295, 2
        %s299 = sadd.s32 %s297, %s298
        %s300 = smul.addr %s299, 4
        %s301 = scalar_lea.vmem %s2, %s300
        %s302 = smul.u32 2, %s23
        %s303 = smul.u32 2, %s23
        %p304 = scmp.lt.s32.totalorder %s22, 1
        %s305 = scalar_select %p304, %s22, 1
        %p306 = scmp.lt.s32.totalorder %s303, 1
        %s307 = scalar_select %p306, %s303, 1
        %s308 = smul.addr %s305, 2
        %s309 = sadd.s32 %s307, %s308
        %s310 = smul.addr %s309, 8
        %s311 = scalar_lea.vmem %s4, %s310
        %s312 = smul.u32 2, %s23
        %s313 = smul.u32 2, %s23
        %p314 = scmp.lt.s32.totalorder %s22, 1
        %s315 = scalar_select %p314, %s22, 1
        %p316 = scmp.lt.s32.totalorder %s313, 1
        %s317 = scalar_select %p316, %s313, 1
        %s318 = smul.addr %s315, 2
        %s319 = sadd.s32 %s317, %s318
        %s320 = smul.addr %s319, 4
        %s321 = scalar_lea.vmem %s5, %s320
        %s322 = smul.u32 2, %s23
        %v324 = vld [vmem:[%s292] sm:$0xf]
        %v325 = vld [vmem:[%s292 + $0x4] sm:$0xf]
        %v326 = vld [vmem:[%s1] sm:$0xf]
        %v327 = vld [vmem:[%s1 + $0x4] sm:$0xf]
        %v328 = vld [vmem:[%s1 + $0x8] sm:$0xf]
        %v329 = vld [vmem:[%s1 + $0xc] sm:$0xf]
        %v332 = vunpack.c.l.b16 %v324
        %v333 = vunpack.c.l.b16 %v325
        %v334 = vpack.c.b16 %v333, %v332
        %v339 = vunpack.c.l.b16 %v326
        %v340 = vunpack.c.l.b16 %v327
        %v341 = vunpack.c.l.b16 %v328
        %v342 = vunpack.c.l.b16 %v329
        %v343 = vpack.c.b16 %v340, %v339
        %v344 = vpack.c.b16 %v342, %v341
        %vm347 = vcmask 261120
        %v349 = vsel %vm347, %v334, 0
        %351 = vmatpush.bf16.msra.mxu0 0
        %352 = vmatpush.bf16.msra.mxu0 0
        %353 = vmatpush.bf16.msra.mxu0 0
        %354 = vmatpush.bf16.msra.mxu0 0
        %355 = vmatpush.bf16.msra.mxu0 0
        %356 = vmatpush.bf16.msra.mxu0 0
        %357 = vmatpush.bf16.msra.mxu0 %v344
        %358 = vmatpush.bf16.msra.mxu0 %v343
        %359 = vmatmul.bf16.gmra.mxu0 %v349
        %v360 = vpop.f32.mrf.mxu0
        %v361 = vadd.f32 0.0, %v360
        %v362 = vpop.f32.mrf.mxu0
        %v363 = vadd.f32 0.0, %v362
        %364 = vdwg.mxu0
        %v365 = vpack.c.bf16 %v363, %v361
        %v366 = vld [vmem:[%s301] sm:$0xf]
        %v367 = vld [vmem:[%s301 + $0x4] sm:$0xf]
        %v368 = vld [vmem:[#allocation2] sm:$0x1]
        %v370 = vperm.slane %v368, 0
        %v374 = vunpack.c.l.b16 %v366
        %v375 = vunpack.c.l.b16 %v367
        %v376 = vpack.c.b16 %v375, %v374
        %vm377 = vcmask 130048
        %v379 = vsel %vm377, %v376, 0
        %381 = vmatpush.bf16.msra.mxu0 0
        %382 = vmatpush.bf16.msra.mxu0 0
        %383 = vmatpush.bf16.msra.mxu0 0
        %384 = vmatpush.bf16.msra.mxu0 0
        %385 = vmatpush.bf16.msra.mxu0 0
        %386 = vmatpush.bf16.msra.mxu0 0
        %387 = vmatpush.bf16.msra.mxu0 0
        %388 = vmatpush.bf16.msra.mxu0 %v365
        %389 = vmatmul.bf16.gmra.mxu0 %v379
        %v390 = vpop.f32.mrf.mxu0
        %v391 = vadd.f32 %v370, %v390
        %v392 = vpop.f32.mrf.mxu0
        %v393 = vadd.f32 %v370, %v392
        %394 = vdwg.mxu0
        %v395 = vmax.f32 %v391, 0.0
        %v396 = vmax.f32 %v393, 0.0
        %397 = vst.msk [vmem:[%s311] sm:$0xff] %vm347, %v395
        %398 = vst.msk [vmem:[%s311 + $0x8] sm:$0xff] %vm347, %v396
        %v399 = vpack.c.bf16 %v395, %v395
        %v400 = vpack.c.bf16 %v396, %v396
        %vm401 = vcmask 257024
        %402 = vst.msk [vmem:[%s321] sm:$0xf] %vm401, %v399
        %403 = vst.msk [vmem:[%s321 + $0x4] sm:$0xf] %vm401, %v400
        %s404 = smul.u32 2, %s23
        %p405 = scmp.lt.s32.totalorder %s22, 1
        %s406 = scalar_select %p405, %s22, 1
        %p407 = scmp.lt.s32.totalorder %s404, 1
        %s408 = scalar_select %p407, %s404, 1
        %s409 = smul.addr %s406, 2
        %s410 = sadd.s32 %s408, %s409
        %s411 = smul.addr %s410, 8
        %s412 = scalar_lea.vmem %s4, %s411
        %s413 = smul.u32 2, %s23
        %p414 = scmp.lt.s32.totalorder %s22, 1
        %s415 = scalar_select %p414, %s22, 1
        %p416 = scmp.lt.s32.totalorder %s413, 1
        %s417 = scalar_select %p416, %s413, 1
        %s418 = smul.addr %s415, 2
        %s419 = sadd.s32 %s417, %s418
        %s420 = smul.addr %s419, 4
        %s421 = scalar_lea.vmem %s5, %s420
        // Predicated region
        $region41: #{dgm_d_forward.2} parent=35 // pred_check
          %p422 = pneg %p146
        $region42: #{dgm_d_forward.2} parent=35 // pred_check_branch
          %424 = sbr.rel (%p422) target = $region44
        $region43: #{dgm_d_forward.2} parent=35 // pred_region
          %s425 = smul.u32 2, %s23
        $region44: #{dgm_d_forward.2} parent=35 // pred_fallthru
          _
        // Predicated region
        $region45: #{dgm_d_forward.2} parent=35 // pred_check
          %p426 = pneg %p174
        $region46: #{dgm_d_forward.2} parent=35 // pred_check_branch
          %428 = sbr.rel (%p426) target = $region48
        $region47: #{dgm_d_forward.2} parent=35 // pred_region
          %s429 = smul.u32 2, %s23
        $region48: #{dgm_d_forward.2} parent=35 // pred_fallthru
          _
      $region36: #{dgm_d_forward.2} parent=5 // pred_fallthru
        _
      %p430 = scmp.le.s32.totalorder 2, %s13
      // Predicated region
      $region49: #{dgm_d_forward.2} parent=5 // pred_check
        %p431 = pneg %p430
      $region50: #{dgm_d_forward.2} parent=5 // pred_check_branch
        %433 = sbr.rel (%p431) target = $region52
      $region51: #{dgm_d_forward.2} parent=5 // pred_region
        %s434 = ssub.s32 %s13, 2
        // Predicated region
        $region53: #{dgm_d_forward.2} parent=51 // pred_check
          %p435 = pneg %p152
        $region54: #{dgm_d_forward.2} parent=51 // pred_check_branch
          %437 = sbr.rel (%p435) target = $region56
        $region55: #{dgm_d_forward.2} parent=51 // pred_region
          %s438 = smul.u32 2, %s25
          %p439 = scmp.lt.s32.totalorder %s24, 1
          %s440 = scalar_select %p439, %s24, 1
          %p441 = scmp.lt.s32.totalorder %s438, 1
          %s442 = scalar_select %p441, %s438, 1
          %s443 = smul.addr %s440, 2
          %s444 = sadd.s32 %s442, %s443
          %s445 = smul.addr %s444, 8
          %s446 = scalar_lea.vmem %s4, %s445
        $region56: #{dgm_d_forward.2} parent=51 // pred_fallthru
          _
        // Predicated region
        $region57: #{dgm_d_forward.2} parent=51 // pred_check
          %p447 = pneg %p180
        $region58: #{dgm_d_forward.2} parent=51 // pred_check_branch
          %449 = sbr.rel (%p447) target = $region60
        $region59: #{dgm_d_forward.2} parent=51 // pred_region
          %s450 = smul.u32 2, %s25
          %p451 = scmp.lt.s32.totalorder %s24, 1
          %s452 = scalar_select %p451, %s24, 1
          %p453 = scmp.lt.s32.totalorder %s450, 1
          %s454 = scalar_select %p453, %s450, 1
          %s455 = smul.addr %s452, 2
          %s456 = sadd.s32 %s454, %s455
          %s457 = smul.addr %s456, 4
          %s458 = scalar_lea.vmem %s5, %s457
        $region60: #{dgm_d_forward.2} parent=51 // pred_fallthru
          _
      $region52: #{dgm_d_forward.2} parent=5 // pred_fallthru
        _
    $region6: #{dgm_d_forward.2} parent=1 // loop_footer
      %s17 = sadd.s32 1, %s13
    $region7: #{dgm_d_forward.2} parent=1 // loop_footer_branch
      %12 = sbr.rel target = $region3
    $region8: #{dgm_d_forward.2} parent=1 // loop_exit
      _
    %459 = vsyncpa [#allocation3], 1
    %s460 = scalar_lea.sflag [#allocation3], 1
    %461 = vsyncpa %s460, 1

</llo_original>
